<compile_context>
chip_gen: v5e
topology: v5e:2x2
jax: 0.10.0
libtpu: 0.0.40
codegen_flags: <defaults>
</compile_context>

<pallas_src>
import jax
import jax.numpy as jnp
from jax.experimental import pallas as pl
from jax.experimental.pallas import tpu as pltpu


def _reghead_kernel(x_ref, w_ref, b_ref, o_ref):
    # x_ref: (TB, HW, C) ; w_ref: (C, OutP) (pre-scaled by 1/HW) ;
    # b_ref: (1, OutP)   ; o_ref: (TB, OutP)
    # Global average pool == sum over the sublane (spatial) axis; the 1/HW
    # scale is folded into w_ref.  Accumulate the sum in f32 without upcasting
    # the whole tile.
    pooled = jnp.sum(x_ref[...], axis=1, dtype=jnp.float32)          # (TB, C)
    # TODO(synk): dropout is identity in eval mode; train-mode masking would
    # need pltpu.prng_seed / prng_random_bits.
    out = jnp.dot(pooled.astype(w_ref.dtype), w_ref[...],
                  preferred_element_type=jnp.float32)                # (TB, OutP)
    out = out + b_ref[...].astype(jnp.float32)                       # broadcast
    o_ref[...] = out.astype(o_ref.dtype)


def _default_vmem_limit_bytes():
    # Size the scoped VMEM request against the chip generation (v7x only has
    # 64 MiB physical per TensorCore), leaving headroom for compiler scratch.
    try:
        phys = pltpu.get_tpu_info().vmem_capacity_bytes
    except Exception:
        phys = 64 << 20
    return min(96 << 20, int(phys * 3 // 4))


def _pick_block_b(B, HW, C, itemsize, vmem_limit_bytes):
    # Budget ~half the scoped VMEM for the double-buffered x tiles; the rest is
    # headroom for the (tiny, resident) weight/bias and the output buffers.
    budget = vmem_limit_bytes // 2
    tb = max(1, budget // (2 * HW * C * itemsize))
    if tb >= B:
        return B                       # whole batch in one tile
    return max(8, (tb // 8) * 8)       # keep the output sublane dim 8-aligned


def reg_head_forward(x_nchw, weight, bias, *, block_b=None,
                     vmem_limit_bytes=None):
    """x_nchw: (B, C, H, W); weight: (Out, C) torch-style; bias: (Out,)."""
    B, C, H, W = x_nchw.shape
    HW = H * W
    Out = weight.shape[0]
    itemsize = jnp.dtype(x_nchw.dtype).itemsize

    if vmem_limit_bytes is None:
        vmem_limit_bytes = _default_vmem_limit_bytes()
    if block_b is None:
        block_b = _pick_block_b(B, HW, C, itemsize, vmem_limit_bytes)

    # (B, C, H, W) -> (B, HW, C): C on the lane axis, HW on sublanes.
    x_bhwc = jnp.transpose(x_nchw.reshape(B, C, HW), (0, 2, 1))

    # Fold the 1/(H*W) pooling scale into the transposed weight (paid once at
    # trace time); pad Out to a lane-dense multiple of 128 with zeros.
    w_t = (weight.T / HW).astype(weight.dtype)                       # (C, Out)
    out_p = max(128, pl.cdiv(Out, 128) * 128)
    pad = out_p - Out
    if pad:
        w_t = jnp.pad(w_t, ((0, 0), (0, pad)))
        b_vec = jnp.pad(bias, (0, pad))
    else:
        b_vec = bias
    b2 = b_vec.reshape(1, out_p)

    grid = (pl.cdiv(B, block_b),)

    x_bytes = B * HW * C * itemsize
    out_bytes = B * out_p * itemsize
    cost = pl.CostEstimate(
        flops=2 * B * C * out_p + B * HW * C,
        transcendentals=0,
        bytes_accessed=x_bytes + w_t.size * w_t.dtype.itemsize
        + b2.size * b2.dtype.itemsize + out_bytes,
    )

    out_padded = pl.pallas_call(
        _reghead_kernel,
        out_shape=jax.ShapeDtypeStruct((B, out_p), x_nchw.dtype),
        grid_spec=pltpu.PrefetchScalarGridSpec(
            num_scalar_prefetch=0,
            grid=grid,
            in_specs=[
                # x tile streams over B (double-buffered by Pallas).
                pl.BlockSpec((block_b, HW, C), lambda i: (i, 0, 0)),
                # Weight / bias stay VMEM-resident across grid steps.
                pl.BlockSpec((C, out_p), lambda i: (0, 0)),
                pl.BlockSpec((1, out_p), lambda i: (0, 0)),
            ],
            out_specs=pl.BlockSpec((block_b, out_p), lambda i: (i, 0)),
        ),
        compiler_params=pltpu.CompilerParams(
            dimension_semantics=("parallel",),
            vmem_limit_bytes=vmem_limit_bytes,
        ),
        cost_estimate=cost,
    )(x_bhwc, w_t, b2)

    return out_padded[:, :Out]


if __name__ == "__main__":
    # Small shapes consistent with the module (RegNet-style head, 7x7 spatial).
    B, C, H, W, OUT = 4, 128, 7, 7, 40

    key = jax.random.PRNGKey(0)
    kx, kw, kb = jax.random.split(key, 3)
    x = jax.random.normal(kx, (B, C, H, W), dtype=jnp.float32)
    # nn.Linear default init: U(-1/sqrt(in), 1/sqrt(in)); deterministic here.
    bound = 1.0 / jnp.sqrt(jnp.float32(C))
    weight = jax.random.uniform(kw, (OUT, C), minval=-bound, maxval=bound,
                                dtype=jnp.float32)
    bias = jax.random.uniform(kb, (OUT,), minval=-bound, maxval=bound,
                              dtype=jnp.float32)

    out = reg_head_forward(x, weight, bias)
    out = jax.block_until_ready(out)

    # Reference check (plain JAX) for forward-pass semantics (eval-mode dropout
    # is identity).
    ref = jnp.mean(x, axis=(2, 3)) @ weight.T + bias
    assert out.shape == (B, OUT)
    assert jnp.allclose(out, ref, atol=1e-5, rtol=1e-5)

    print("KERNEL_OK")
</pallas_src>

<mosaic_0001>
module attributes {stable_mosaic.version = 11 : i64} {
  func.func @_reghead_kernel(%arg0: i32, %arg1: memref<4x49x128xf32, #tpu.memory_space<vmem>>, %arg2: memref<128x128xf32, #tpu.memory_space<vmem>>, %arg3: memref<1x128xf32, #tpu.memory_space<vmem>>, %arg4: memref<4x128xf32, #tpu.memory_space<vmem>>) attributes {dimension_semantics = [#tpu.dimension_semantics<parallel>], iteration_bounds = array<i64: 1>, scalar_prefetch = 0 : i64, scratch_operands = 0 : i64, tpu.core_type = #tpu.core_type<tc>, window_params = [{transform_indices = @transform_0, window_bounds = array<i64: 4, 49, 128>}, {pipeline_mode = #tpu.pipeline_mode<synchronous>, transform_indices = @transform_1, window_bounds = array<i64: 128, 128>}, {pipeline_mode = #tpu.pipeline_mode<synchronous>, transform_indices = @transform_2, window_bounds = array<i64: 1, 128>}, {transform_indices = @transform_3, window_bounds = array<i64: 4, 128>}]} {
    %c0 = arith.constant 0 : index
    %c0_0 = arith.constant 0 : index
    %c0_1 = arith.constant 0 : index
    %0 = vector.load %arg1[%c0, %c0_0, %c0_1] : memref<4x49x128xf32, #tpu.memory_space<vmem>>, vector<4x49x128xf32>
    %cst = arith.constant dense<0.000000e+00> : vector<4x128xf32>
    %1 = vector.multi_reduction <add>, %0, %cst [1] : vector<4x49x128xf32> to vector<4x128xf32>
    %c0_2 = arith.constant 0 : index
    %c0_3 = arith.constant 0 : index
    %2 = vector.load %arg2[%c0_2, %c0_3] : memref<128x128xf32, #tpu.memory_space<vmem>>, vector<128x128xf32>
    %cst_4 = arith.constant dense<0.000000e+00> : vector<4x128xf32>
    %3 = tpu.matmul %1, %2, %cst_4 {dimension_numbers = #tpu.dot_dimension_numbers<[1], [0], [0], [1], [0, 0, 1, 1], [], []>} : vector<4x128xf32>, vector<128x128xf32>, vector<4x128xf32> -> vector<4x128xf32>
    %c0_5 = arith.constant 0 : index
    %c0_6 = arith.constant 0 : index
    %4 = vector.load %arg3[%c0_5, %c0_6] : memref<1x128xf32, #tpu.memory_space<vmem>>, vector<1x128xf32>
    %5 = vector.broadcast %4 : vector<1x128xf32> to vector<4x128xf32>
    %6 = arith.addf %3, %5 : vector<4x128xf32>
    %c0_7 = arith.constant 0 : index
    %c0_8 = arith.constant 0 : index
    %7 = vector.load %arg4[%c0_7, %c0_8] : memref<4x128xf32, #tpu.memory_space<vmem>>, vector<4x128xf32>
    tpu.vector_store %arg4[%c0_7, %c0_8], %6 {strides = array<i32>} : memref<4x128xf32, #tpu.memory_space<vmem>>, vector<4x128xf32>,
    return
  }
  func.func @transform_0(%arg0: i32) -> (i32, i32, i32) {
    %c0_i32 = arith.constant 0 : i32
    %c0_i32_0 = arith.constant 0 : i32
    %c0_i32_1 = arith.constant 0 : i32
    return %arg0, %c0_i32, %c0_i32_0 : i32, i32, i32
  }
  func.func @transform_1(%arg0: i32) -> (i32, i32) {
    %c0_i32 = arith.constant 0 : i32
    %c0_i32_0 = arith.constant 0 : i32
    %c0_i32_1 = arith.constant 0 : i32
    return %c0_i32, %c0_i32_0 : i32, i32
  }
  func.func @transform_2(%arg0: i32) -> (i32, i32) {
    %c0_i32 = arith.constant 0 : i32
    %c0_i32_0 = arith.constant 0 : i32
    %c0_i32_1 = arith.constant 0 : i32
    return %c0_i32, %c0_i32_0 : i32, i32
  }
  func.func @transform_3(%arg0: i32) -> (i32, i32) {
    %c0_i32 = arith.constant 0 : i32
    %c0_i32_0 = arith.constant 0 : i32
    return %arg0, %c0_i32 : i32, i32
  }
}

</mosaic_0001>

<llo_original>
// kernel: tpu_custom_call.1
$region0: #{tpu_custom_call.1}
  #allocation0 [shape = 'u32[]', space=smem, size = 0x4, offset = 0x4, fixed_abs, tag = 'smem constant byte address 0x4 - core index']
  #allocation1 [shape = 'u32[72,128]{1,0:T(1,128)}', space=vmem, size = 0x9000, scoped, tag = 'internal scratch']
  %s0 = inlined_call_operand.vmem [shape: f32[4,49,128], index: 0, kind: input, shape index: {}]
  %s1 = inlined_call_operand.vmem [shape: f32[128,128], index: 1, kind: input, shape index: {}]
  %s2 = inlined_call_operand.vmem [shape: f32[1,128], index: 2, kind: input, shape index: {}]
  %s3 = inlined_call_operand.hbm [shape: f32[4,128], index: 3, kind: output, shape index: {}]
  %s4 = sld [smem:[#allocation0]]
  $region22: #{tpu_custom_call.1} parent=0
    _
  %s6 = ssub.s32 1, %s4
  %s7 = scalar_select 0, %s6, %s4
  $region1: #{tpu_custom_call.1} parent=0
    #allocation2 [shape = 'u8[2048]{0}', space=vmem, size = 0x800, scoped, tag = 'output window, operand 0, single buffered']
    #allocation3 [shape = 's32[1]{0}', space=sflag, size = 0x4, scoped, tag = 'scoped memory for tpu_custom_call.1']
    %8 = vsyncpa [#allocation3], 0
    // Predicated region
    $region2: #{tpu_custom_call.1} parent=1 // pred_check
      _
    $region3: #{tpu_custom_call.1} parent=1 // pred_check_branch
      %10 = sbr.rel (0) target = $region5
    $region4: #{tpu_custom_call.1} parent=1 // pred_region
      _
    $region5: #{tpu_custom_call.1} parent=1 // pred_fallthru
      _
    // Predicated region
    $region6: #{tpu_custom_call.1} parent=1 // pred_check
      _
    $region7: #{tpu_custom_call.1} parent=1 // pred_check_branch
      %12 = sbr.rel (0) target = $region9
    $region8: #{tpu_custom_call.1} parent=1 // pred_region
      _
    $region9: #{tpu_custom_call.1} parent=1 // pred_fallthru
      _
    // Predicated region
    $region10: #{tpu_custom_call.1} parent=1 // pred_check
      _
    $region11: #{tpu_custom_call.1} parent=1 // pred_check_branch
      %14 = sbr.rel (0) target = $region13
    $region12: #{tpu_custom_call.1} parent=1 // pred_region
      _
    $region13: #{tpu_custom_call.1} parent=1 // pred_fallthru
      _
    %v15 = vld [vmem:[%s0] sm:$0xff]
    %v16 = vld [vmem:[%s0 + $0x8] sm:$0xff]
    %v17 = vld [vmem:[%s0 + $0x10] sm:$0xff]
    %v18 = vld [vmem:[%s0 + $0x18] sm:$0xff]
    %v19 = vld [vmem:[%s0 + $0x20] sm:$0xff]
    %v20 = vld [vmem:[%s0 + $0x28] sm:$0xff]
    %v21 = vld [vmem:[%s0 + $0x30] sm:$0x1]
    %v22 = vld [vmem:[%s0 + $0x38] sm:$0xff]
    %v23 = vld [vmem:[%s0 + $0x40] sm:$0xff]
    %v24 = vld [vmem:[%s0 + $0x48] sm:$0xff]
    %v25 = vld [vmem:[%s0 + $0x50] sm:$0xff]
    %v26 = vld [vmem:[%s0 + $0x58] sm:$0xff]
    %v27 = vld [vmem:[%s0 + $0x60] sm:$0xff]
    %v28 = vld [vmem:[%s0 + $0x68] sm:$0x1]
    %v29 = vld [vmem:[%s0 + $0x70] sm:$0xff]
    %v30 = vld [vmem:[%s0 + $0x78] sm:$0xff]
    %v31 = vld [vmem:[%s0 + $0x80] sm:$0xff]
    %v32 = vld [vmem:[%s0 + $0x88] sm:$0xff]
    %v33 = vld [vmem:[%s0 + $0x90] sm:$0xff]
    %v34 = vld [vmem:[%s0 + $0x98] sm:$0xff]
    %v35 = vld [vmem:[%s0 + $0xa0] sm:$0x1]
    %v36 = vld [vmem:[%s0 + $0xa8] sm:$0xff]
    %v37 = vld [vmem:[%s0 + $0xb0] sm:$0xff]
    %v38 = vld [vmem:[%s0 + $0xb8] sm:$0xff]
    %v39 = vld [vmem:[%s0 + $0xc0] sm:$0xff]
    %v40 = vld [vmem:[%s0 + $0xc8] sm:$0xff]
    %v41 = vld [vmem:[%s0 + $0xd0] sm:$0xff]
    %v42 = vld [vmem:[%s0 + $0xd8] sm:$0x1]
    %v43 = vadd.f32 %v15, %v16
    %v44 = vadd.f32 %v43, %v17
    %v45 = vadd.f32 %v44, %v18
    %v46 = vadd.f32 %v45, %v19
    %v47 = vadd.f32 %v46, %v20
    %vm48 = vcmask 1040384
    %v49 = vsel %vm48, %v21, 0.0
    %v50 = vadd.f32 %v47, %v49
    %v51 = vrot.slane %v50, 4
    %v52 = vadd.f32 %v50, %v51
    %v53 = vrot.slane %v52, 2
    %v54 = vadd.f32 %v52, %v53
    %v55 = vrot.slane %v54, 1
    %v56 = vadd.f32 %v54, %v55
    %v57 = vadd.f32 %v22, %v23
    %v58 = vadd.f32 %v57, %v24
    %v59 = vadd.f32 %v58, %v25
    %v60 = vadd.f32 %v59, %v26
    %v61 = vadd.f32 %v60, %v27
    %v62 = vsel %vm48, %v28, 0.0
    %v63 = vadd.f32 %v61, %v62
    %v64 = vrot.slane %v63, 4
    %v65 = vadd.f32 %v63, %v64
    %v66 = vrot.slane %v65, 2
    %v67 = vadd.f32 %v65, %v66
    %v68 = vrot.slane %v67, 1
    %v69 = vadd.f32 %v67, %v68
    %v70 = vadd.f32 %v29, %v30
    %v71 = vadd.f32 %v70, %v31
    %v72 = vadd.f32 %v71, %v32
    %v73 = vadd.f32 %v72, %v33
    %v74 = vadd.f32 %v73, %v34
    %v75 = vsel %vm48, %v35, 0.0
    %v76 = vadd.f32 %v74, %v75
    %v77 = vrot.slane %v76, 4
    %v78 = vadd.f32 %v76, %v77
    %v79 = vrot.slane %v78, 2
    %v80 = vadd.f32 %v78, %v79
    %v81 = vrot.slane %v80, 1
    %v82 = vadd.f32 %v80, %v81
    %v83 = vadd.f32 %v36, %v37
    %v84 = vadd.f32 %v83, %v38
    %v85 = vadd.f32 %v84, %v39
    %v86 = vadd.f32 %v85, %v40
    %v87 = vadd.f32 %v86, %v41
    %v88 = vsel %vm48, %v42, 0.0
    %v89 = vadd.f32 %v87, %v88
    %v90 = vrot.slane %v89, 4
    %v91 = vadd.f32 %v89, %v90
    %v92 = vrot.slane %v91, 2
    %v93 = vadd.f32 %v91, %v92
    %v94 = vrot.slane %v93, 1
    %v95 = vadd.f32 %v93, %v94
    %v96 = vld [vmem:[%s1] sm:$0xff]
    %v97 = vld [vmem:[%s1 + $0x8] sm:$0xff]
    %v98 = vld [vmem:[%s1 + $0x10] sm:$0xff]
    %v99 = vld [vmem:[%s1 + $0x18] sm:$0xff]
    %v100 = vld [vmem:[%s1 + $0x20] sm:$0xff]
    %v101 = vld [vmem:[%s1 + $0x28] sm:$0xff]
    %v102 = vld [vmem:[%s1 + $0x30] sm:$0xff]
    %v103 = vld [vmem:[%s1 + $0x38] sm:$0xff]
    %v104 = vld [vmem:[%s1 + $0x40] sm:$0xff]
    %v105 = vld [vmem:[%s1 + $0x48] sm:$0xff]
    %v106 = vld [vmem:[%s1 + $0x50] sm:$0xff]
    %v107 = vld [vmem:[%s1 + $0x58] sm:$0xff]
    %v108 = vld [vmem:[%s1 + $0x60] sm:$0xff]
    %v109 = vld [vmem:[%s1 + $0x68] sm:$0xff]
    %v110 = vld [vmem:[%s1 + $0x70] sm:$0xff]
    %v111 = vld [vmem:[%s1 + $0x78] sm:$0xff]
    %v112 = vld [vmem:[%s2] sm:$0x1]
    %v114 = vperm.slane %v112, 0
    %vm120 = vcmask 1041409
    %v121 = vsel %vm120, %v69, %v56
    %vm122 = vcmask 1042434
    %v123 = vsel %vm122, %v82, %v121
    %vm124 = vcmask 1043459
    %v125 = vsel %vm124, %v95, %v123
    %127 = vmatpush.msra.mxu0 %v111
    %128 = vmatpush.msra.mxu0 %v110
    %129 = vmatpush.msra.mxu0 %v109
    %130 = vmatpush.msra.mxu0 %v108
    %131 = vmatpush.msra.mxu0 %v107
    %132 = vmatpush.msra.mxu0 %v106
    %133 = vmatpush.msra.mxu0 %v105
    %134 = vmatpush.msra.mxu0 %v104
    %135 = vmatpush.msra.mxu0 %v103
    %136 = vmatpush.msra.mxu0 %v102
    %137 = vmatpush.msra.mxu0 %v101
    %138 = vmatpush.msra.mxu0 %v100
    %139 = vmatpush.msra.mxu0 %v99
    %140 = vmatpush.msra.mxu0 %v98
    %141 = vmatpush.msra.mxu0 %v97
    %142 = vmatpush.msra.mxu0 %v96
    %143 = vmatmul.f32.gmra.mxu0 %v125
    %v144 = vpop.f32.mrf.mxu0
    %v145 = vadd.f32 %v114, %v144
    %146 = vdwg.mxu0
    %147 = vst [vmem:[#allocation2] sm:$0xf] %v145
    // Predicated region
    $region14: #{tpu_custom_call.1} parent=1 // pred_check
      _
    $region15: #{tpu_custom_call.1} parent=1 // pred_check_branch
      %149 = sbr.rel (0) target = $region17
    $region16: #{tpu_custom_call.1} parent=1 // pred_region
      %151 = vsyncadd [#allocation3], 0
      %s153 = sshll.u32 [#allocation2], 4
      %s154 = int_to_ptr.vmem [resolvable:$true] %s153
      %s155 = sshll.u32 %s3, 4
      %s156 = int_to_ptr.hbm [resolvable:$true] %s155
      %158 = dma.vmem_to_hbm [thread:$0]  %s154, 64, %s156, [#allocation3]
    $region17: #{tpu_custom_call.1} parent=1 // pred_fallthru
      _
    // Predicated region
    $region18: #{tpu_custom_call.1} parent=1 // pred_check
      _
    $region19: #{tpu_custom_call.1} parent=1 // pred_check_branch
      %160 = sbr.rel (0) target = $region21
    $region20: #{tpu_custom_call.1} parent=1 // pred_region
      %162 = dma.done [#allocation3], 64
    $region21: #{tpu_custom_call.1} parent=1 // pred_fallthru
      _
    %163 = vsyncpa [#allocation3], 1

</llo_original>
